<compile_context>
chip_gen: v7x
topology: tpu7x:2x2x1
jax: 0.10.0
libtpu: 0.0.40
codegen_flags: <defaults>
</compile_context>

<pallas_src>
import functools

import jax
import jax.numpy as jnp
from jax.experimental import pallas as pl
from jax.experimental.pallas import tpu as pltpu

LANE = 128


def _round_up(x, m):
    return ((x + m - 1) // m) * m


def _vmem_budget_bytes():
    """~85% of this generation's physical per-core VMEM (leave Mosaic headroom)."""
    cap = 0
    try:
        info = pltpu.get_tpu_info()
        for name in ("vmem_capacity_bytes", "vmem_size_bytes", "vmem_bytes"):
            val = getattr(info, name, None)
            if val:
                cap = int(val)
                break
    except Exception:
        cap = 0
    if cap <= 0:
        cap = 64 << 20  # conservative fallback = v7x per-TensorCore VMEM
    return int(cap * 0.85)


# ---------------------------------------------------------------------------
# Adjacency build (XLA side): raw (A + I) counts + D^{-1/2} column.
# ---------------------------------------------------------------------------
def build_gcn_adjacency(edge_index, num_nodes, padded_nodes=None):
    """Matches torch_geometric gcn_norm(add_self_loops=True, improved=False):
       * messages aggregate at the destination: A[dst, src] += 1 (duplicates add)
       * existing self-loop edges are replaced by a single weight-1 self loop
       * deg[i] = sum_j (A + I)[i, j] (destination-side degree)
    D^{-1/2} is applied inside the Pallas kernel so the bf16 matrix entries
    stay exact integers."""
    np_ = int(padded_nodes) if padded_nodes is not None else int(num_nodes)
    src, dst = edge_index[0], edge_index[1]
    keep = src != dst  # self-loop edges are dropped and re-added with weight 1
    num_edges = int(src.shape[0])

    if num_edges * np_ <= (1 << 24):
        # One-hot MXU build: A = onehot(dst)^T @ onehot(src) (duplicates add).
        nodes = jnp.arange(np_, dtype=src.dtype)
        oh_dst = (dst[:, None] == nodes[None, :]).astype(jnp.float32)
        oh_dst = oh_dst * keep.astype(jnp.float32)[:, None]
        oh_src = (src[:, None] == nodes[None, :]).astype(jnp.float32)
        a = jnp.dot(oh_dst.T, oh_src)
    else:
        # TODO(synk): very large edge lists would be better served by a
        # scalar-prefetched edge-list Pallas kernel than by this XLA scatter.
        a = jnp.zeros((np_, np_), jnp.float32)
        a = a.at[dst, src].add(keep.astype(jnp.float32))

    real = (jnp.arange(np_) < num_nodes).astype(jnp.float32)
    a = a + jnp.eye(np_, dtype=jnp.float32) * real[:, None]     # remaining self loops
    deg = jnp.sum(a, axis=1)
    d_inv_sqrt = jnp.where(deg > 0.0, jax.lax.rsqrt(jnp.maximum(deg, 1.0)), 0.0)
    return a.astype(jnp.bfloat16), d_inv_sqrt[:, None].astype(jnp.float32)


# ---------------------------------------------------------------------------
# Kernel 1: fully resident fused forward (small / medium N).
# ---------------------------------------------------------------------------
def _resident_gcn_kernel(*refs, n_layers):
    a_ref, d_ref, x_ref = refs[0], refs[1], refs[2]
    conv_w = refs[3:3 + n_layers]
    conv_b = refs[3 + n_layers:3 + 2 * n_layers]
    wfc_ref, bfc_ref = refs[3 + 2 * n_layers], refs[4 + 2 * n_layers]
    h_ref, y_ref = refs[5 + 2 * n_layers], refs[6 + 2 * n_layers]

    a = a_ref[...]        # (N, N) bf16, exact (A + I) edge counts
    d = d_ref[...]        # (N, 1) f32 D^{-1/2}
    h = x_ref[...]        # (N, F0) bf16

    out = None
    for i in range(n_layers):
        # Always Â@(H@W): the N^2 matmul runs at the padded output width.
        t = jnp.dot(h, conv_w[i][...], preferred_element_type=jnp.float32)
        t = (t * d).astype(jnp.bfloat16)
        out = jnp.dot(a, t, preferred_element_type=jnp.float32) * d + conv_b[i][...]
        if i + 1 < n_layers:
            h = jnp.maximum(out, 0.0).astype(jnp.bfloat16)

    # Features = last conv output WITHOUT relu, lane-dense bf16.
    h_ref[...] = out.astype(h_ref.dtype)
    # Head: y = fc(relu(x)) fused (relu(h) never round-trips HBM).
    act = jnp.maximum(out, 0.0).astype(jnp.bfloat16)
    y_ref[...] = (jnp.dot(act, wfc_ref[...], preferred_element_type=jnp.float32)
                  + bfc_ref[...]).astype(y_ref.dtype)


# ---------------------------------------------------------------------------
# Kernel 2: row-tiled fused forward (large N / VMEM-bounded).
# grid = (layer, row_block); Â streamed in (TM, N) blocks; T and relu(H) live
# in persistent VMEM scratch.
# ---------------------------------------------------------------------------
def _tiled_gcn_kernel(*refs, n_layers, tm):
    a_ref, d_full_ref, d_rows_ref, x_ref = refs[0], refs[1], refs[2], refs[3]
    conv_w = refs[4:4 + n_layers]
    conv_b = refs[4 + n_layers:4 + 2 * n_layers]
    wfc_ref, bfc_ref = refs[4 + 2 * n_layers], refs[5 + 2 * n_layers]
    h_ref, y_ref = refs[6 + 2 * n_layers], refs[7 + 2 * n_layers]
    t_ref, hact_ref = refs[8 + 2 * n_layers], refs[9 + 2 * n_layers]

    layer = pl.program_id(0)
    row = pl.program_id(1)
    row0 = pl.multiple_of(row * tm, tm)

    d_full = d_full_ref[...]      # (Np, 1) f32
    d_rows = d_rows_ref[...]      # (tm, 1) f32
    a_blk = a_ref[...]            # (tm, Np) bf16

    for lyr in range(n_layers):   # unrolled at trace time; gated by pl.when
        on_layer = layer == lyr

        # Once per layer (first row tile): T = D^{-1/2} * (g(H) @ W_l) in VMEM.
        @pl.when(on_layer & (row == 0))
        def _(lyr=lyr):
            if lyr == 0:
                h_in = x_ref[...]
            else:
                h_in = hact_ref[...].astype(jnp.bfloat16)
            t = jnp.dot(h_in, conv_w[lyr][...], preferred_element_type=jnp.float32)
            t_ref[...] = (t * d_full).astype(jnp.bfloat16)

        # Every row tile: out_rows = D^{-1/2}_rows * ((A+I)_rows @ T) + b_l.
        @pl.when(on_layer)
        def _(lyr=lyr):
            acc = jnp.dot(a_blk, t_ref[...], preferred_element_type=jnp.float32)
            out = acc * d_rows + conv_b[lyr][...]
            if lyr + 1 < n_layers:
                hact_ref[pl.ds(row0, tm), :] = jnp.maximum(out, 0.0)
            else:
                h_ref[0] = out.astype(h_ref.dtype)
                act = jnp.maximum(out, 0.0).astype(jnp.bfloat16)
                y_ref[0] = (jnp.dot(act, wfc_ref[...],
                                    preferred_element_type=jnp.float32)
                            + bfc_ref[...]).astype(y_ref.dtype)


# ---------------------------------------------------------------------------
# Wrappers
# ---------------------------------------------------------------------------
def _full_spec(shape):
    return pl.BlockSpec(shape, lambda: (0,) * len(shape))


def _pad_params(params, f_in0):
    """Zero-pad weight/bias lane dims to multiples of 128 (lane-dense outputs)."""
    conv_w_p, conv_b_p = [], []
    prev = f_in0
    for w, b in zip(params["conv_w"], params["conv_b"]):
        fi, fo = w.shape
        po = _round_up(fo, LANE)
        wp = jnp.zeros((prev, po), jnp.float32).at[:fi, :fo].set(w)
        conv_w_p.append(wp.astype(jnp.bfloat16))
        conv_b_p.append(jnp.zeros((1, po), jnp.float32).at[0, :fo].set(b))
        prev = po
    hidden, n_out = params["fc_w"].shape
    pc = _round_up(n_out, LANE)
    wfc = (jnp.zeros((prev, pc), jnp.float32)
           .at[:hidden, :n_out].set(params["fc_w"])).astype(jnp.bfloat16)
    bfc = jnp.zeros((1, pc), jnp.float32).at[0, :n_out].set(params["fc_b"])
    return conv_w_p, conv_b_p, wfc, bfc, prev, pc


def _cost_estimate(np_, f0, conv_w_p, pc, a_reads):
    flops, k = 0, f0
    bytes_accessed = a_reads * np_ * np_ * 2 + np_ * f0 * 2 + 4 * np_
    for w in conv_w_p:
        fo = w.shape[1]
        flops += 2 * np_ * k * fo + 2 * np_ * np_ * fo
        bytes_accessed += w.size * 2 + fo * 4
        k = fo
    flops += 2 * np_ * k * pc
    bytes_accessed += k * pc * 2 + pc * 4 + 2 * np_ * (k + pc)
    return pl.CostEstimate(flops=int(flops), transcendentals=0,
                           bytes_accessed=int(bytes_accessed))


def _pick_row_tile(n, budget):
    tm = 512
    while tm > 8:
        np_ = _round_up(n, tm)
        if 2 * (2 * tm * np_) <= budget // 3:   # double-buffered bf16 Â blocks
            break
        tm //= 2
    return max(tm, 8)


def _resident_call(a, d, xp, conv_w_p, conv_b_p, wfc, bfc, hp, pc, vmem_limit, cost):
    n = a.shape[0]
    n_layers = len(conv_w_p)
    operands = [a, d, xp] + conv_w_p + conv_b_p + [wfc, bfc]
    kern = functools.partial(_resident_gcn_kernel, n_layers=n_layers)
    return pl.pallas_call(
        kern,
        out_shape=(jax.ShapeDtypeStruct((n, hp), jnp.bfloat16),
                   jax.ShapeDtypeStruct((n, pc), jnp.bfloat16)),
        in_specs=[_full_spec(op.shape) for op in operands],
        out_specs=(_full_spec((n, hp)), _full_spec((n, pc))),
        compiler_params=pltpu.CompilerParams(vmem_limit_bytes=int(vmem_limit)),
        cost_estimate=cost,
    )(*operands)


def _tiled_call(a, d, xp, conv_w_p, conv_b_p, wfc, bfc, hp, pc, tm, vmem_limit, cost):
    np_ = a.shape[0]
    n_layers = len(conv_w_p)
    assert all(w.shape[1] == hp for w in conv_w_p), "uniform padded hidden expected"
    grid = (n_layers, np_ // tm)

    def resident(shape):
        return pl.BlockSpec(shape, lambda l, i, n=len(shape): (0,) * n)

    in_specs = ([pl.BlockSpec((tm, np_), lambda l, i: (i, 0)),   # streamed Â rows
                 resident(d.shape),                              # full D^{-1/2}
                 pl.BlockSpec((tm, 1), lambda l, i: (i, 0)),     # row-block D^{-1/2}
                 resident(xp.shape)]
                + [resident(w.shape) for w in conv_w_p]
                + [resident(b.shape) for b in conv_b_p]
                + [resident(wfc.shape), resident(bfc.shape)])

    # Per-layer output slabs (only the last layer's slab is real; earlier slabs
    # are discarded by the wrapper) => every output block is written exactly once.
    out_specs = (pl.BlockSpec((1, tm, hp), lambda l, i: (l, i, 0)),
                 pl.BlockSpec((1, tm, pc), lambda l, i: (l, i, 0)))

    kern = functools.partial(_tiled_gcn_kernel, n_layers=n_layers, tm=tm)
    return pl.pallas_call(
        kern,
        grid=grid,
        out_shape=(jax.ShapeDtypeStruct((n_layers, np_, hp), jnp.bfloat16),
                   jax.ShapeDtypeStruct((n_layers, np_, pc), jnp.bfloat16)),
        in_specs=in_specs,
        out_specs=out_specs,
        scratch_shapes=[pltpu.VMEM((np_, hp), jnp.bfloat16),   # T = d*(H@W)
                        pltpu.VMEM((np_, hp), jnp.float32)],   # relu(H) carry
        compiler_params=pltpu.CompilerParams(
            dimension_semantics=("arbitrary", "arbitrary"),
            vmem_limit_bytes=int(vmem_limit)),
        cost_estimate=cost,
    )(a, d, d, xp, *conv_w_p, *conv_b_p, wfc, bfc)


# ---------------------------------------------------------------------------
# GCNFeatures forward (bayes=False path: no dropout / drop_edge at eval)
# ---------------------------------------------------------------------------
def gcn_features_forward(x, edge_index, params, edge_attr=None, *,
                         row_tile=None, force_tiled=False):
    # TODO(synk): edge_attr is ignored, matching GCNConv's edge_weight=None
    # default; weighted edges would scale the (A+I) entries in the build.
    del edge_attr
    n, f0 = x.shape
    n_layers = len(params["conv_w"])
    hidden = params["conv_w"][-1].shape[1]
    n_out = params["fc_w"].shape[1]

    conv_w_p, conv_b_p, wfc, bfc, hp, pc = _pad_params(params, f0)

    budget = _vmem_budget_bytes()
    headroom = 8 << 20

    small_bytes = (4 * n + 2 * n * f0
                   + sum(w.size * 2 for w in conv_w_p)
                   + sum(b.size * 4 for b in conv_b_p)
                   + wfc.size * 2 + bfc.size * 4
                   + 2 * n * (hp + pc))
    resident_bytes = 2 * n * n + small_bytes      # Â counted once (no pipeline)
    use_tiled = force_tiled or (resident_bytes + headroom > budget)

    if not use_tiled:
        a, d = build_gcn_adjacency(edge_index, n)
        xp = x.astype(jnp.bfloat16)
        cost = _cost_estimate(n, f0, conv_w_p, pc, a_reads=1)
        vmem_limit = min(budget, max(resident_bytes + headroom, 32 << 20))
        h_pad, y_pad = _resident_call(a, d, xp, conv_w_p, conv_b_p, wfc, bfc,
                                      hp, pc, vmem_limit, cost)
    else:
        tm = int(row_tile) if row_tile is not None else _pick_row_tile(n, budget)
        np_ = _round_up(n, tm)
        a, d = build_gcn_adjacency(edge_index, n, np_)
        xp = jnp.zeros((np_, f0), jnp.bfloat16).at[:n].set(x.astype(jnp.bfloat16))
        cost = _cost_estimate(np_, f0, conv_w_p, pc, a_reads=n_layers)
        tiled_bytes = (2 * (2 * tm * np_)            # double-buffered Â blocks
                       + np_ * hp * (2 + 4)          # T + relu(H) scratch
                       + 2 * 2 * tm * (hp + pc) * 2  # double-buffered out blocks
                       + small_bytes)
        vmem_limit = min(budget, max(tiled_bytes + headroom, 32 << 20))
        h_all, y_all = _tiled_call(a, d, xp, conv_w_p, conv_b_p, wfc, bfc,
                                   hp, pc, tm, vmem_limit, cost)
        h_pad, y_pad = h_all[-1], y_all[-1]

    feats = h_pad[:n, :hidden].astype(jnp.float32)
    logits = y_pad[:n, :n_out].astype(jnp.float32)
    return feats, logits


# ---------------------------------------------------------------------------
# Deterministic parameter init + example run
# ---------------------------------------------------------------------------
def init_params(key, f_in, hidden, n_out, n_layers=2):
    dims = [f_in] + [hidden] * n_layers
    keys = jax.random.split(key, 2 * n_layers + 2)
    conv_w, conv_b = [], []
    for i in range(n_layers):
        fan_in, fan_out = dims[i], dims[i + 1]
        scale = jnp.sqrt(2.0 / (fan_in + fan_out))
        conv_w.append(scale * jax.random.normal(keys[2 * i], (fan_in, fan_out), jnp.float32))
        conv_b.append(0.01 * jax.random.normal(keys[2 * i + 1], (fan_out,), jnp.float32))
    fc_scale = jnp.sqrt(2.0 / (hidden + n_out))
    fc_w = fc_scale * jax.random.normal(keys[-2], (hidden, n_out), jnp.float32)
    fc_b = 0.01 * jax.random.normal(keys[-1], (n_out,), jnp.float32)
    return {"conv_w": conv_w, "conv_b": conv_b, "fc_w": fc_w, "fc_b": fc_b}


if __name__ == "__main__":
    key = jax.random.PRNGKey(0)
    k_x, k_e, k_p = jax.random.split(key, 3)

    N, F_IN, HIDDEN, N_OUT, N_EDGES = 64, 16, 32, 4, 256

    x = jax.random.normal(k_x, (N, F_IN), jnp.float32)
    edge_index = jax.random.randint(k_e, (2, N_EDGES), 0, N, dtype=jnp.int32)
    params = init_params(k_p, F_IN, HIDDEN, N_OUT, n_layers=2)

    # Small-N fully resident path.
    feats, logits = gcn_features_forward(x, edge_index, params)
    # Row-tiled large-N path, exercised at small shapes (TM=32 -> grid (2, 2)).
    feats_t, logits_t = gcn_features_forward(x, edge_index, params,
                                             force_tiled=True, row_tile=32)
    jax.block_until_ready((feats, logits, feats_t, logits_t))

    assert feats.shape == (N, HIDDEN) and logits.shape == (N, N_OUT)
    assert feats_t.shape == (N, HIDDEN) and logits_t.shape == (N, N_OUT)
    assert bool(jnp.all(jnp.isfinite(feats))) and bool(jnp.all(jnp.isfinite(logits)))
    assert bool(jnp.all(jnp.isfinite(feats_t))) and bool(jnp.all(jnp.isfinite(logits_t)))
    # The two paths compute the identical bf16/f32 math; allow loose tolerance.
    assert bool(jnp.allclose(feats, feats_t, atol=2e-2, rtol=2e-2))
    assert bool(jnp.allclose(logits, logits_t, atol=2e-2, rtol=2e-2))
    print("KERNEL_OK")
</pallas_src>

<mosaic_0001>
module attributes {stable_mosaic.version = 11 : i64} {
  func.func @_resident_gcn_kernel(%arg0: memref<64x64xbf16, #tpu.memory_space<vmem>>, %arg1: memref<64x1xf32, #tpu.memory_space<vmem>>, %arg2: memref<64x16xbf16, #tpu.memory_space<vmem>>, %arg3: memref<16x128xbf16, #tpu.memory_space<vmem>>, %arg4: memref<128x128xbf16, #tpu.memory_space<vmem>>, %arg5: memref<1x128xf32, #tpu.memory_space<vmem>>, %arg6: memref<1x128xf32, #tpu.memory_space<vmem>>, %arg7: memref<128x128xbf16, #tpu.memory_space<vmem>>, %arg8: memref<1x128xf32, #tpu.memory_space<vmem>>, %arg9: memref<64x128xbf16, #tpu.memory_space<vmem>>, %arg10: memref<64x128xbf16, #tpu.memory_space<vmem>>) attributes {dimension_semantics = [], scalar_prefetch = 0 : i64, scratch_operands = 0 : i64, tpu.core_type = #tpu.core_type<tc>} {
    %c0 = arith.constant 0 : index
    %c0_0 = arith.constant 0 : index
    %0 = vector.load %arg0[%c0, %c0_0] : memref<64x64xbf16, #tpu.memory_space<vmem>>, vector<64x64xbf16>
    %c0_1 = arith.constant 0 : index
    %c0_2 = arith.constant 0 : index
    %1 = vector.load %arg1[%c0_1, %c0_2] : memref<64x1xf32, #tpu.memory_space<vmem>>, vector<64x1xf32>
    %c0_3 = arith.constant 0 : index
    %c0_4 = arith.constant 0 : index
    %2 = vector.load %arg2[%c0_3, %c0_4] : memref<64x16xbf16, #tpu.memory_space<vmem>>, vector<64x16xbf16>
    %c0_5 = arith.constant 0 : index
    %c0_6 = arith.constant 0 : index
    %3 = vector.load %arg3[%c0_5, %c0_6] : memref<16x128xbf16, #tpu.memory_space<vmem>>, vector<16x128xbf16>
    %cst = arith.constant dense<0.000000e+00> : vector<64x128xf32>
    %4 = tpu.matmul %2, %3, %cst {dimension_numbers = #tpu.dot_dimension_numbers<[1], [0], [0], [1], [0, 0, 1, 1], [], []>} : vector<64x16xbf16>, vector<16x128xbf16>, vector<64x128xf32> -> vector<64x128xf32>
    %5 = vector.broadcast %1 : vector<64x1xf32> to vector<64x128xf32>
    %6 = arith.mulf %4, %5 : vector<64x128xf32>
    %7 = arith.truncf %6 : vector<64x128xf32> to vector<64x128xbf16>
    %cst_7 = arith.constant dense<0.000000e+00> : vector<64x128xf32>
    %8 = tpu.matmul %0, %7, %cst_7 {dimension_numbers = #tpu.dot_dimension_numbers<[1], [0], [0], [1], [0, 0, 1, 1], [], []>} : vector<64x64xbf16>, vector<64x128xbf16>, vector<64x128xf32> -> vector<64x128xf32>
    %9 = vector.broadcast %1 : vector<64x1xf32> to vector<64x128xf32>
    %10 = arith.mulf %8, %9 : vector<64x128xf32>
    %c0_8 = arith.constant 0 : index
    %c0_9 = arith.constant 0 : index
    %11 = vector.load %arg5[%c0_8, %c0_9] : memref<1x128xf32, #tpu.memory_space<vmem>>, vector<1x128xf32>
    %12 = vector.broadcast %11 : vector<1x128xf32> to vector<64x128xf32>
    %13 = arith.addf %10, %12 : vector<64x128xf32>
    %cst_10 = arith.constant 0.000000e+00 : f32
    %14 = vector.broadcast %cst_10 : f32 to vector<64x128xf32>
    %15 = arith.maximumf %13, %14 : vector<64x128xf32>
    %16 = arith.truncf %15 : vector<64x128xf32> to vector<64x128xbf16>
    %c0_11 = arith.constant 0 : index
    %c0_12 = arith.constant 0 : index
    %17 = vector.load %arg4[%c0_11, %c0_12] : memref<128x128xbf16, #tpu.memory_space<vmem>>, vector<128x128xbf16>
    %cst_13 = arith.constant dense<0.000000e+00> : vector<64x128xf32>
    %18 = tpu.matmul %16, %17, %cst_13 {dimension_numbers = #tpu.dot_dimension_numbers<[1], [0], [0], [1], [0, 0, 1, 1], [], []>} : vector<64x128xbf16>, vector<128x128xbf16>, vector<64x128xf32> -> vector<64x128xf32>
    %19 = vector.broadcast %1 : vector<64x1xf32> to vector<64x128xf32>
    %20 = arith.mulf %18, %19 : vector<64x128xf32>
    %21 = arith.truncf %20 : vector<64x128xf32> to vector<64x128xbf16>
    %cst_14 = arith.constant dense<0.000000e+00> : vector<64x128xf32>
    %22 = tpu.matmul %0, %21, %cst_14 {dimension_numbers = #tpu.dot_dimension_numbers<[1], [0], [0], [1], [0, 0, 1, 1], [], []>} : vector<64x64xbf16>, vector<64x128xbf16>, vector<64x128xf32> -> vector<64x128xf32>
    %23 = vector.broadcast %1 : vector<64x1xf32> to vector<64x128xf32>
    %24 = arith.mulf %22, %23 : vector<64x128xf32>
    %c0_15 = arith.constant 0 : index
    %c0_16 = arith.constant 0 : index
    %25 = vector.load %arg6[%c0_15, %c0_16] : memref<1x128xf32, #tpu.memory_space<vmem>>, vector<1x128xf32>
    %26 = vector.broadcast %25 : vector<1x128xf32> to vector<64x128xf32>
    %27 = arith.addf %24, %26 : vector<64x128xf32>
    %28 = arith.truncf %27 : vector<64x128xf32> to vector<64x128xbf16>
    %c0_17 = arith.constant 0 : index
    %c0_18 = arith.constant 0 : index
    %29 = vector.load %arg9[%c0_17, %c0_18] : memref<64x128xbf16, #tpu.memory_space<vmem>>, vector<64x128xbf16>
    tpu.vector_store %arg9[%c0_17, %c0_18], %28 {strides = array<i32>} : memref<64x128xbf16, #tpu.memory_space<vmem>>, vector<64x128xbf16>,
    %cst_19 = arith.constant 0.000000e+00 : f32
    %30 = vector.broadcast %cst_19 : f32 to vector<64x128xf32>
    %31 = arith.maximumf %27, %30 : vector<64x128xf32>
    %32 = arith.truncf %31 : vector<64x128xf32> to vector<64x128xbf16>
    %c0_20 = arith.constant 0 : index
    %c0_21 = arith.constant 0 : index
    %33 = vector.load %arg7[%c0_20, %c0_21] : memref<128x128xbf16, #tpu.memory_space<vmem>>, vector<128x128xbf16>
    %cst_22 = arith.constant dense<0.000000e+00> : vector<64x128xf32>
    %34 = tpu.matmul %32, %33, %cst_22 {dimension_numbers = #tpu.dot_dimension_numbers<[1], [0], [0], [1], [0, 0, 1, 1], [], []>} : vector<64x128xbf16>, vector<128x128xbf16>, vector<64x128xf32> -> vector<64x128xf32>
    %c0_23 = arith.constant 0 : index
    %c0_24 = arith.constant 0 : index
    %35 = vector.load %arg8[%c0_23, %c0_24] : memref<1x128xf32, #tpu.memory_space<vmem>>, vector<1x128xf32>
    %36 = vector.broadcast %35 : vector<1x128xf32> to vector<64x128xf32>
    %37 = arith.addf %34, %36 : vector<64x128xf32>
    %38 = arith.truncf %37 : vector<64x128xf32> to vector<64x128xbf16>
    %c0_25 = arith.constant 0 : index
    %c0_26 = arith.constant 0 : index
    %39 = vector.load %arg10[%c0_25, %c0_26] : memref<64x128xbf16, #tpu.memory_space<vmem>>, vector<64x128xbf16>
    tpu.vector_store %arg10[%c0_25, %c0_26], %38 {strides = array<i32>} : memref<64x128xbf16, #tpu.memory_space<vmem>>, vector<64x128xbf16>,
    return
  }
}

</mosaic_0001>

<llo_original>
// kernel: tpu_custom_call.1
$region0: #{tpu_custom_call.1}
  #allocation0 [shape = 'u32[]', space=smem, size = 0x4, offset = 0x4, fixed_abs, tag = 'smem constant byte address 0x4 - core index']
  #allocation1 [shape = 'u32[144,128]{1,0:T(1,128)}', space=vmem, size = 0x12000, scoped, tag = 'internal scratch']
  %s0 = inlined_call_operand.hbm [shape: bf16[64,64], index: 0, kind: input, shape index: {}]
  %s1 = inlined_call_operand.vmem [shape: f32[64,1], index: 1, kind: input, shape index: {}]
  %s2 = inlined_call_operand.vmem [shape: bf16[64,16], index: 2, kind: input, shape index: {}]
  %s3 = inlined_call_operand.hbm [shape: bf16[16,128], index: 3, kind: input, shape index: {}]
  %s4 = inlined_call_operand.vmem [shape: bf16[128,128], index: 4, kind: input, shape index: {}]
  %s5 = inlined_call_operand.vmem [shape: f32[1,128], index: 5, kind: input, shape index: {}]
  %s6 = inlined_call_operand.vmem [shape: f32[1,128], index: 6, kind: input, shape index: {}]
  %s7 = inlined_call_operand.vmem [shape: bf16[128,128], index: 7, kind: input, shape index: {}]
  %s8 = inlined_call_operand.vmem [shape: f32[1,128], index: 8, kind: input, shape index: {}]
  %s9 = inlined_call_operand.hbm [shape: bf16[64,128], index: 9, kind: output, shape index: {0}]
  %s10 = inlined_call_operand.hbm [shape: bf16[64,128], index: 10, kind: output, shape index: {1}]
  %11 = xla_tuple %s9, %s10
  %s12 = sld [smem:[#allocation0]]
  $region62: #{tpu_custom_call.1} parent=0
    _
  %s14 = ssub.s32 1, %s12
  %s15 = scalar_select 0, %s14, %s12
  $region1: #{tpu_custom_call.1} parent=0
    #allocation2 [shape = 'u8[16384]{0}', space=vmem, size = 0x4000, scoped, tag = 'input window, operand 0, single buffered']
    #allocation3 [shape = 's32[1]{0}', space=sflag, size = 0x4, scoped, tag = 'scoped memory for tpu_custom_call.1']
    #allocation4 [shape = 's32[1]{0}', space=sflag, size = 0x4, scoped, tag = 'scoped memory for tpu_custom_call.1']
    #allocation5 [shape = 'u8[4096]{0}', space=vmem, size = 0x1000, scoped, tag = 'input window, operand 3, single buffered']
    #allocation6 [shape = 's32[1]{0}', space=sflag, size = 0x4, scoped, tag = 'scoped memory for tpu_custom_call.1']
    #allocation7 [shape = 'u8[16384]{0}', space=vmem, size = 0x4000, scoped, tag = 'output window, operand 0, single buffered']
    #allocation8 [shape = 'u8[16384]{0}', space=vmem, size = 0x4000, scoped, tag = 'output window, operand 1, single buffered']
    #allocation9 [shape = 's32[1]{0}', space=sflag, size = 0x4, scoped, tag = 'scoped memory for tpu_custom_call.1']
    %16 = vsyncpa [#allocation3], 0
    %17 = vsyncpa [#allocation6], 0
    %18 = vsyncpa [#allocation4], 0
    %19 = vsyncpa [#allocation9], 0
    // Predicated region
    $region2: #{tpu_custom_call.1} parent=1 // pred_check
      _
    $region3: #{tpu_custom_call.1} parent=1 // pred_check_branch
      %21 = sbr.rel (0) target = $region5
    $region4: #{tpu_custom_call.1} parent=1 // pred_region
      %s23 = ssub.s32 512, 512
      %24 = vsyncadd [#allocation3], %s23
      %s25 = sshll.u32 [#allocation2], 4
      %s26 = int_to_ptr.vmem [resolvable:$true] %s25
      %31 = dma.hbm_to_vmem [thread:$0]  %s0, 512, %s26, [#allocation3], 64, 64, 4
    $region5: #{tpu_custom_call.1} parent=1 // pred_fallthru
      _
    // Predicated region
    $region6: #{tpu_custom_call.1} parent=1 // pred_check
      _
    $region7: #{tpu_custom_call.1} parent=1 // pred_check_branch
      %33 = sbr.rel (0) target = $region9
    $region8: #{tpu_custom_call.1} parent=1 // pred_region
      _
    $region9: #{tpu_custom_call.1} parent=1 // pred_fallthru
      _
    // Predicated region
    $region10: #{tpu_custom_call.1} parent=1 // pred_check
      _
    $region11: #{tpu_custom_call.1} parent=1 // pred_check_branch
      %35 = sbr.rel (0) target = $region13
    $region12: #{tpu_custom_call.1} parent=1 // pred_region
      _
    $region13: #{tpu_custom_call.1} parent=1 // pred_fallthru
      _
    // Predicated region
    $region14: #{tpu_custom_call.1} parent=1 // pred_check
      _
    $region15: #{tpu_custom_call.1} parent=1 // pred_check_branch
      %37 = sbr.rel (0) target = $region17
    $region16: #{tpu_custom_call.1} parent=1 // pred_region
      %s39 = ssub.s32 128, 128
      %40 = vsyncadd [#allocation6], %s39
      %s41 = sshll.u32 [#allocation5], 4
      %s42 = int_to_ptr.vmem [resolvable:$true] %s41
      %47 = dma.hbm_to_vmem [thread:$0]  %s3, 128, %s42, [#allocation6], 64, 64, 4
    $region17: #{tpu_custom_call.1} parent=1 // pred_fallthru
      _
    // Predicated region
    $region18: #{tpu_custom_call.1} parent=1 // pred_check
      _
    $region19: #{tpu_custom_call.1} parent=1 // pred_check_branch
      %49 = sbr.rel (0) target = $region21
    $region20: #{tpu_custom_call.1} parent=1 // pred_region
      _
    $region21: #{tpu_custom_call.1} parent=1 // pred_fallthru
      _
    // Predicated region
    $region22: #{tpu_custom_call.1} parent=1 // pred_check
      _
    $region23: #{tpu_custom_call.1} parent=1 // pred_check_branch
      %51 = sbr.rel (0) target = $region25
    $region24: #{tpu_custom_call.1} parent=1 // pred_region
      _
    $region25: #{tpu_custom_call.1} parent=1 // pred_fallthru
      _
    // Predicated region
    $region26: #{tpu_custom_call.1} parent=1 // pred_check
      _
    $region27: #{tpu_custom_call.1} parent=1 // pred_check_branch
      %53 = sbr.rel (0) target = $region29
    $region28: #{tpu_custom_call.1} parent=1 // pred_region
      _
    $region29: #{tpu_custom_call.1} parent=1 // pred_fallthru
      _
    // Predicated region
    $region30: #{tpu_custom_call.1} parent=1 // pred_check
      _
    $region31: #{tpu_custom_call.1} parent=1 // pred_check_branch
      %55 = sbr.rel (0) target = $region33
    $region32: #{tpu_custom_call.1} parent=1 // pred_region
      _
    $region33: #{tpu_custom_call.1} parent=1 // pred_fallthru
      _
    // Predicated region
    $region34: #{tpu_custom_call.1} parent=1 // pred_check
      _
    $region35: #{tpu_custom_call.1} parent=1 // pred_check_branch
      %57 = sbr.rel (0) target = $region37
    $region36: #{tpu_custom_call.1} parent=1 // pred_region
      _
    $region37: #{tpu_custom_call.1} parent=1 // pred_fallthru
      _
    // Predicated region
    $region38: #{tpu_custom_call.1} parent=1 // pred_check
      _
    $region39: #{tpu_custom_call.1} parent=1 // pred_check_branch
      %59 = sbr.rel (0) target = $region41
    $region40: #{tpu_custom_call.1} parent=1 // pred_region
      %60 = dma.done [#allocation3], 512
    $region41: #{tpu_custom_call.1} parent=1 // pred_fallthru
      _
    // Predicated region
    $region42: #{tpu_custom_call.1} parent=1 // pred_check
      _
    $region43: #{tpu_custom_call.1} parent=1 // pred_check_branch
      %62 = sbr.rel (0) target = $region45
    $region44: #{tpu_custom_call.1} parent=1 // pred_region
      %63 = dma.done [#allocation6], 128
    $region45: #{tpu_custom_call.1} parent=1 // pred_fallthru
      _
    %v65 = vld [vmem:[#allocation2] sm:$0xf]
    %v66 = vld [vmem:[#allocation2 + $0x4] sm:$0xf]
    %v67 = vld [vmem:[#allocation2 + $0x8] sm:$0xf]
    %v68 = vld [vmem:[#allocation2 + $0xc] sm:$0xf]
    %v69 = vld [vmem:[#allocation2 + $0x10] sm:$0xf]
    %v70 = vld [vmem:[#allocation2 + $0x14] sm:$0xf]
    %v71 = vld [vmem:[#allocation2 + $0x18] sm:$0xf]
    %v72 = vld [vmem:[#allocation2 + $0x1c] sm:$0xf]
    %v73 = vld [vmem:[%s1] sm:$0xff]
    %v74 = vld [vmem:[%s1 + $0x8] sm:$0xff]
    %v75 = vld [vmem:[%s1 + $0x10] sm:$0xff]
    %v76 = vld [vmem:[%s1 + $0x18] sm:$0xff]
    %v77 = vld [vmem:[%s1 + $0x20] sm:$0xff]
    %v78 = vld [vmem:[%s1 + $0x28] sm:$0xff]
    %v79 = vld [vmem:[%s1 + $0x30] sm:$0xff]
    %v80 = vld [vmem:[%s1 + $0x38] sm:$0xff]
    %v81 = vld [vmem:[%s2] sm:$0xf]
    %v82 = vld [vmem:[%s2 + $0x4] sm:$0xf]
    %v83 = vld [vmem:[%s2 + $0x8] sm:$0xf]
    %v84 = vld [vmem:[%s2 + $0xc] sm:$0xf]
    %v85 = vld [vmem:[%s2 + $0x10] sm:$0xf]
    %v86 = vld [vmem:[%s2 + $0x14] sm:$0xf]
    %v87 = vld [vmem:[%s2 + $0x18] sm:$0xf]
    %v88 = vld [vmem:[%s2 + $0x1c] sm:$0xf]
    %v89 = vld [vmem:[#allocation5] sm:$0xf]
    %v90 = vld [vmem:[#allocation5 + $0x4] sm:$0xf]
    %v99 = vunpack.c.l.b16 %v81
    %v100 = vunpack.c.l.b16 %v82
    %v101 = vunpack.c.l.b16 %v83
    %v102 = vunpack.c.l.b16 %v84
    %v103 = vunpack.c.l.b16 %v85
    %v104 = vunpack.c.l.b16 %v86
    %v105 = vunpack.c.l.b16 %v87
    %v106 = vunpack.c.l.b16 %v88
    %v107 = vpack.c.b16 %v100, %v99
    %v108 = vpack.c.b16 %v102, %v101
    %v109 = vpack.c.b16 %v104, %v103
    %v110 = vpack.c.b16 %v106, %v105
    %v113 = vunpack.c.l.b16 %v89
    %v114 = vunpack.c.l.b16 %v90
    %v115 = vpack.c.b16 %v114, %v113
    %vm117 = vcmask 130048
    %v119 = vsel %vm117, %v107, 0
    %v122 = vsel %vm117, %v108, 0
    %v125 = vsel %vm117, %v109, 0
    %v128 = vsel %vm117, %v110, 0
    %130 = vmatprep.subr.bf16.mxu0 0
    %131 = vmatpush1.bf16.msra.mxu0 %v115
    %132 = vmatprep.subr.bf16.mxu0 0
    %133 = vmatpush1.bf16.msra.mxu0 0
    %134 = vmatprep.subr.bf16.mxu0 0
    %135 = vmatpush1.bf16.msra.mxu0 0
    %136 = vmatprep.subr.bf16.mxu0 0
    %137 = vmatpush1.bf16.msra.mxu0 0
    %138 = vmatprep.subr.bf16.mxu0 0
    %139 = vmatpush1.bf16.msra.mxu0 0
    %140 = vmatprep.subr.bf16.mxu0 0
    %141 = vmatpush1.bf16.msra.mxu0 0
    %142 = vmatprep.subr.bf16.mxu0 0
    %143 = vmatpush1.bf16.msra.mxu0 0
    %144 = vmatprep.subr.bf16.mxu0 0
    %145 = vmatpush1.bf16.msra.mxu0 0
    %146 = vmatprep.subr.bf16.mxu0 0
    %147 = vmatpush1.bf16.msra.mxu0 0
    %148 = vmatprep.subr.bf16.mxu0 0
    %149 = vmatpush1.bf16.msra.mxu0 0
    %150 = vmatprep.subr.bf16.mxu0 0
    %151 = vmatpush1.bf16.msra.mxu0 0
    %152 = vmatprep.subr.bf16.mxu0 0
    %153 = vmatpush1.bf16.msra.mxu0 0
    %154 = vmatprep.subr.bf16.mxu0 0
    %155 = vmatpush1.bf16.msra.mxu0 0
    %156 = vmatprep.subr.bf16.mxu0 0
    %157 = vmatpush1.bf16.msra.mxu0 0
    %158 = vmatprep.subr.bf16.mxu0 0
    %159 = vmatpush1.bf16.msra.mxu0 0
    %160 = vmatprep.subr.bf16.mxu0 0
    %161 = vmatpush1.bf16.msra.mxu0 0
    %162 = vmatprep.mubr.bf16.mxu0 0
    %163 = vmatmul.mubr.bf16.gmra.mrb[0].mxu0 %v119
    %v164 = vpop.f32.mrb[0].mxu0
    %v165 = vadd.f32 0.0, %v164
    %v166 = vpop.f32.mrb[0].mxu0
    %v167 = vpop.f32.mrb[0].mxu0
    %v168 = vadd.f32 0.0, %v167
    %v169 = vpop.f32.mrb[0].mxu0
    %170 = vmatprep.mubr.bf16.mxu0 0
    %171 = vmatmul.mubr.bf16.gmra.mrb[0].mxu0 %v122
    %v172 = vpop.f32.mrb[0].mxu0
    %v173 = vadd.f32 0.0, %v172
    %v174 = vpop.f32.mrb[0].mxu0
    %v175 = vpop.f32.mrb[0].mxu0
    %v176 = vadd.f32 0.0, %v175
    %v177 = vpop.f32.mrb[0].mxu0
    %178 = vmatprep.mubr.bf16.mxu0 0
    %179 = vmatmul.mubr.bf16.gmra.mrb[0].mxu0 %v125
    %v180 = vpop.f32.mrb[0].mxu0
    %v181 = vadd.f32 0.0, %v180
    %v182 = vpop.f32.mrb[0].mxu0
    %v183 = vpop.f32.mrb[0].mxu0
    %v184 = vadd.f32 0.0, %v183
    %v185 = vpop.f32.mrb[0].mxu0
    %186 = vmatprep.mubr.bf16.mxu0 0
    %187 = vmatmul.mubr.bf16.gmra.mrb[0].mxu0 %v128
    %v188 = vpop.f32.mrb[0].mxu0
    %v189 = vadd.f32 0.0, %v188
    %v190 = vpop.f32.mrb[0].mxu0
    %v191 = vpop.f32.mrb[0].mxu0
    %v192 = vadd.f32 0.0, %v191
    %v193 = vpop.f32.mrb[0].mxu0
    %194 = vdwg.mxu0
    %196 = vset.pattern.permute.xlu0 0
    %197 = vperm.xlu0 %196, %v73
    %v198 = vpop.permute.xlu0 %197
    %201 = vset.pattern.permute.xlu0 0
    %202 = vperm.xlu0 %201, %v74
    %v203 = vpop.permute.xlu0 %202
    %206 = vset.pattern.permute.xlu0 0
    %207 = vperm.xlu0 %206, %v75
    %v208 = vpop.permute.xlu0 %207
    %211 = vset.pattern.permute.xlu0 0
    %212 = vperm.xlu0 %211, %v76
    %v213 = vpop.permute.xlu0 %212
    %216 = vset.pattern.permute.xlu0 0
    %217 = vperm.xlu0 %216, %v77
    %v218 = vpop.permute.xlu0 %217
    %221 = vset.pattern.permute.xlu0 0
    %222 = vperm.xlu0 %221, %v78
    %v223 = vpop.permute.xlu0 %222
    %226 = vset.pattern.permute.xlu0 0
    %227 = vperm.xlu0 %226, %v79
    %v228 = vpop.permute.xlu0 %227
    %231 = vset.pattern.permute.xlu0 0
    %232 = vperm.xlu0 %231, %v80
    %v233 = vpop.permute.xlu0 %232
    %v235 = vmul.f32 %v165, %v198
    %v236 = vmul.f32 %v168, %v203
    %v237 = vmul.f32 %v173, %v208
    %v238 = vmul.f32 %v176, %v213
    %v239 = vmul.f32 %v181, %v218
    %v240 = vmul.f32 %v184, %v223
    %v241 = vmul.f32 %v189, %v228
    %v242 = vmul.f32 %v192, %v233
    %v243 = vpack.c.bf16 %v236, %v235
    %v244 = vpack.c.bf16 %v238, %v237
    %v245 = vpack.c.bf16 %v240, %v239
    %v246 = vpack.c.bf16 %v242, %v241
    %v255 = vunpack.c.l.b16 %v65
    %v256 = vunpack.c.l.b16 %v66
    %v257 = vunpack.c.l.b16 %v67
    %v258 = vunpack.c.l.b16 %v68
    %v259 = vunpack.c.l.b16 %v69
    %v260 = vunpack.c.l.b16 %v70
    %v261 = vunpack.c.l.b16 %v71
    %v262 = vunpack.c.l.b16 %v72
    %v263 = vpack.c.b16 %v256, %v255
    %v264 = vpack.c.b16 %v258, %v257
    %v265 = vpack.c.b16 %v260, %v259
    %v266 = vpack.c.b16 %v262, %v261
    %vm267 = vcmask 523264
    %v269 = vsel %vm267, %v263, 0
    %v272 = vsel %vm267, %v264, 0
    %v275 = vsel %vm267, %v265, 0
    %v278 = vsel %vm267, %v266, 0
    %280 = vmatprep.subr.bf16.mxu0 0
    %281 = vmatpush1.bf16.msra.mxu0 %v243
    %282 = vmatprep.subr.bf16.mxu0 0
    %283 = vmatpush1.bf16.msra.mxu0 %v244
    %284 = vmatprep.subr.bf16.mxu0 0
    %285 = vmatpush1.bf16.msra.mxu0 %v245
    %286 = vmatprep.subr.bf16.mxu0 0
    %287 = vmatpush1.bf16.msra.mxu0 %v246
    %288 = vmatprep.subr.bf16.mxu0 0
    %289 = vmatpush1.bf16.msra.mxu0 0
    %290 = vmatprep.subr.bf16.mxu0 0
    %291 = vmatpush1.bf16.msra.mxu0 0
    %292 = vmatprep.subr.bf16.mxu0 0
    %293 = vmatpush1.bf16.msra.mxu0 0
    %294 = vmatprep.subr.bf16.mxu0 0
    %295 = vmatpush1.bf16.msra.mxu0 0
    %296 = vmatprep.subr.bf16.mxu0 0
    %297 = vmatpush1.bf16.msra.mxu0 0
    %298 = vmatprep.subr.bf16.mxu0 0
    %299 = vmatpush1.bf16.msra.mxu0 0
    %300 = vmatprep.subr.bf16.mxu0 0
    %301 = vmatpush1.bf16.msra.mxu0 0
    %302 = vmatprep.subr.bf16.mxu0 0
    %303 = vmatpush1.bf16.msra.mxu0 0
    %304 = vmatprep.subr.bf16.mxu0 0
    %305 = vmatpush1.bf16.msra.mxu0 0
    %306 = vmatprep.subr.bf16.mxu0 0
    %307 = vmatpush1.bf16.msra.mxu0 0
    %308 = vmatprep.subr.bf16.mxu0 0
    %309 = vmatpush1.bf16.msra.mxu0 0
    %310 = vmatprep.subr.bf16.mxu0 0
    %311 = vmatpush1.bf16.msra.mxu0 0
    %312 = vmatprep.mubr.bf16.mxu0 0
    %313 = vmatmul.mubr.bf16.gmra.mrb[0].mxu0 %v269
    %v314 = vpop.f32.mrb[0].mxu0
    %v315 = vadd.f32 0.0, %v314
    %v316 = vpop.f32.mrb[0].mxu0
    %v317 = vpop.f32.mrb[0].mxu0
    %v318 = vadd.f32 0.0, %v317
    %v319 = vpop.f32.mrb[0].mxu0
    %320 = vmatprep.mubr.bf16.mxu0 0
    %321 = vmatmul.mubr.bf16.gmra.mrb[0].mxu0 %v272
    %v322 = vpop.f32.mrb[0].mxu0
    %v323 = vadd.f32 0.0, %v322
    %v324 = vpop.f32.mrb[0].mxu0
    %v325 = vpop.f32.mrb[0].mxu0
    %v326 = vadd.f32 0.0, %v325
    %v327 = vpop.f32.mrb[0].mxu0
    %328 = vmatprep.mubr.bf16.mxu0 0
    %329 = vmatmul.mubr.bf16.gmra.mrb[0].mxu0 %v275
    %v330 = vpop.f32.mrb[0].mxu0
    %v331 = vadd.f32 0.0, %v330
    %v332 = vpop.f32.mrb[0].mxu0
    %v333 = vpop.f32.mrb[0].mxu0
    %v334 = vadd.f32 0.0, %v333
    %v335 = vpop.f32.mrb[0].mxu0
    %336 = vmatprep.mubr.bf16.mxu0 0
    %337 = vmatmul.mubr.bf16.gmra.mrb[0].mxu0 %v278
    %v338 = vpop.f32.mrb[0].mxu0
    %v339 = vadd.f32 0.0, %v338
    %v340 = vpop.f32.mrb[0].mxu0
    %v341 = vpop.f32.mrb[0].mxu0
    %v342 = vadd.f32 0.0, %v341
    %v343 = vpop.f32.mrb[0].mxu0
    %344 = vdwg.mxu0
    %v345 = vmul.f32 %v315, %v198
    %v346 = vmul.f32 %v318, %v203
    %v347 = vmul.f32 %v323, %v208
    %v348 = vmul.f32 %v326, %v213
    %v349 = vmul.f32 %v331, %v218
    %v350 = vmul.f32 %v334, %v223
    %v351 = vmul.f32 %v339, %v228
    %v352 = vmul.f32 %v342, %v233
    %v353 = vld [vmem:[%s5] sm:$0x1]
    %v355 = vlaneseq
    %v356 = vshrl.u32 %v355, 7
    %v357 = vsub.s32 0, %v356
    %v358 = vrot.slane %v353, %v357
    %v360 = vadd.f32 %v345, %v358
    %v361 = vadd.f32 %v346, %v358
    %v362 = vadd.f32 %v347, %v358
    %v363 = vadd.f32 %v348, %v358
    %v364 = vadd.f32 %v349, %v358
    %v365 = vadd.f32 %v350, %v358
    %v366 = vadd.f32 %v351, %v358
    %v367 = vadd.f32 %v352, %v358
    %v368 = vmax.f32 %v360, 0.0
    %v369 = vmax.f32 %v361, 0.0
    %v370 = vmax.f32 %v362, 0.0
    %v371 = vmax.f32 %v363, 0.0
    %v372 = vmax.f32 %v364, 0.0
    %v373 = vmax.f32 %v365, 0.0
    %v374 = vmax.f32 %v366, 0.0
    %v375 = vmax.f32 %v367, 0.0
    %v376 = vpack.c.bf16 %v369, %v368
    %v377 = vpack.c.bf16 %v371, %v370
    %v378 = vpack.c.bf16 %v373, %v372
    %v379 = vpack.c.bf16 %v375, %v374
    %v380 = vld [vmem:[%s4] sm:$0xf]
    %v381 = vld [vmem:[%s4 + $0x4] sm:$0xf]
    %v382 = vld [vmem:[%s4 + $0x8] sm:$0xf]
    %v383 = vld [vmem:[%s4 + $0xc] sm:$0xf]
    %v384 = vld [vmem:[%s4 + $0x10] sm:$0xf]
    %v385 = vld [vmem:[%s4 + $0x14] sm:$0xf]
    %v386 = vld [vmem:[%s4 + $0x18] sm:$0xf]
    %v387 = vld [vmem:[%s4 + $0x1c] sm:$0xf]
    %v388 = vld [vmem:[%s4 + $0x20] sm:$0xf]
    %v389 = vld [vmem:[%s4 + $0x24] sm:$0xf]
    %v390 = vld [vmem:[%s4 + $0x28] sm:$0xf]
    %v391 = vld [vmem:[%s4 + $0x2c] sm:$0xf]
    %v392 = vld [vmem:[%s4 + $0x30] sm:$0xf]
    %v393 = vld [vmem:[%s4 + $0x34] sm:$0xf]
    %v394 = vld [vmem:[%s4 + $0x38] sm:$0xf]
    %v395 = vld [vmem:[%s4 + $0x3c] sm:$0xf]
    %v412 = vunpack.c.l.b16 %v380
    %v413 = vunpack.c.l.b16 %v381
    %v414 = vunpack.c.l.b16 %v382
    %v415 = vunpack.c.l.b16 %v383
    %v416 = vunpack.c.l.b16 %v384
    %v417 = vunpack.c.l.b16 %v385
    %v418 = vunpack.c.l.b16 %v386
    %v419 = vunpack.c.l.b16 %v387
    %v420 = vunpack.c.l.b16 %v388
    %v421 = vunpack.c.l.b16 %v389
    %v422 = vunpack.c.l.b16 %v390
    %v423 = vunpack.c.l.b16 %v391
    %v424 = vunpack.c.l.b16 %v392
    %v425 = vunpack.c.l.b16 %v393
    %v426 = vunpack.c.l.b16 %v394
    %v427 = vunpack.c.l.b16 %v395
    %v428 = vpack.c.b16 %v413, %v412
    %v429 = vpack.c.b16 %v415, %v414
    %v430 = vpack.c.b16 %v417, %v416
    %v431 = vpack.c.b16 %v419, %v418
    %v432 = vpack.c.b16 %v421, %v420
    %v433 = vpack.c.b16 %v423, %v422
    %v434 = vpack.c.b16 %v425, %v424
    %v435 = vpack.c.b16 %v427, %v426
    %444 = vmatprep.subr.bf16.mxu0 0
    %445 = vmatpush1.bf16.msra.mxu0 %v428
    %446 = vmatprep.subr.bf16.mxu0 0
    %447 = vmatpush1.bf16.msra.mxu0 %v429
    %448 = vmatprep.subr.bf16.mxu0 0
    %449 = vmatpush1.bf16.msra.mxu0 %v430
    %450 = vmatprep.subr.bf16.mxu0 0
    %451 = vmatpush1.bf16.msra.mxu0 %v431
    %452 = vmatprep.subr.bf16.mxu0 0
    %453 = vmatpush1.bf16.msra.mxu0 %v432
    %454 = vmatprep.subr.bf16.mxu0 0
    %455 = vmatpush1.bf16.msra.mxu0 %v433
    %456 = vmatprep.subr.bf16.mxu0 0
    %457 = vmatpush1.bf16.msra.mxu0 %v434
    %458 = vmatprep.subr.bf16.mxu0 0
    %459 = vmatpush1.bf16.msra.mxu0 %v435
    %460 = vmatprep.subr.bf16.mxu0 0
    %461 = vmatpush1.bf16.msra.mxu0 0
    %462 = vmatprep.subr.bf16.mxu0 0
    %463 = vmatpush1.bf16.msra.mxu0 0
    %464 = vmatprep.subr.bf16.mxu0 0
    %465 = vmatpush1.bf16.msra.mxu0 0
    %466 = vmatprep.subr.bf16.mxu0 0
    %467 = vmatpush1.bf16.msra.mxu0 0
    %468 = vmatprep.subr.bf16.mxu0 0
    %469 = vmatpush1.bf16.msra.mxu0 0
    %470 = vmatprep.subr.bf16.mxu0 0
    %471 = vmatpush1.bf16.msra.mxu0 0
    %472 = vmatprep.subr.bf16.mxu0 0
    %473 = vmatpush1.bf16.msra.mxu0 0
    %474 = vmatprep.subr.bf16.mxu0 0
    %475 = vmatpush1.bf16.msra.mxu0 0
    %476 = vmatprep.mubr.bf16.mxu0 0
    %477 = vmatmul.mubr.bf16.gmra.mrb[0].mxu0 %v376
    %v478 = vpop.f32.mrb[0].mxu0
    %v479 = vadd.f32 0.0, %v478
    %v480 = vpop.f32.mrb[0].mxu0
    %v481 = vpop.f32.mrb[0].mxu0
    %v482 = vadd.f32 0.0, %v481
    %v483 = vpop.f32.mrb[0].mxu0
    %484 = vmatprep.mubr.bf16.mxu0 0
    %485 = vmatmul.mubr.bf16.gmra.mrb[0].mxu0 %v377
    %v486 = vpop.f32.mrb[0].mxu0
    %v487 = vadd.f32 0.0, %v486
    %v488 = vpop.f32.mrb[0].mxu0
    %v489 = vpop.f32.mrb[0].mxu0
    %v490 = vadd.f32 0.0, %v489
    %v491 = vpop.f32.mrb[0].mxu0
    %492 = vmatprep.mubr.bf16.mxu0 0
    %493 = vmatmul.mubr.bf16.gmra.mrb[0].mxu0 %v378
    %v494 = vpop.f32.mrb[0].mxu0
    %v495 = vadd.f32 0.0, %v494
    %v496 = vpop.f32.mrb[0].mxu0
    %v497 = vpop.f32.mrb[0].mxu0
    %v498 = vadd.f32 0.0, %v497
    %v499 = vpop.f32.mrb[0].mxu0
    %500 = vmatprep.mubr.bf16.mxu0 0
    %501 = vmatmul.mubr.bf16.gmra.mrb[0].mxu0 %v379
    %v502 = vpop.f32.mrb[0].mxu0
    %v503 = vadd.f32 0.0, %v502
    %v504 = vpop.f32.mrb[0].mxu0
    %v505 = vpop.f32.mrb[0].mxu0
    %v506 = vadd.f32 0.0, %v505
    %v507 = vpop.f32.mrb[0].mxu0
    %508 = vdwg.mxu0
    %v509 = vmul.f32 %v479, %v198
    %v510 = vmul.f32 %v482, %v203
    %v511 = vmul.f32 %v487, %v208
    %v512 = vmul.f32 %v490, %v213
    %v513 = vmul.f32 %v495, %v218
    %v514 = vmul.f32 %v498, %v223
    %v515 = vmul.f32 %v503, %v228
    %v516 = vmul.f32 %v506, %v233
    %v517 = vpack.c.bf16 %v510, %v509
    %v518 = vpack.c.bf16 %v512, %v511
    %v519 = vpack.c.bf16 %v514, %v513
    %v520 = vpack.c.bf16 %v516, %v515
    %521 = vmatprep.subr.bf16.mxu0 0
    %522 = vmatpush1.bf16.msra.mxu0 %v517
    %523 = vmatprep.subr.bf16.mxu0 0
    %524 = vmatpush1.bf16.msra.mxu0 %v518
    %525 = vmatprep.subr.bf16.mxu0 0
    %526 = vmatpush1.bf16.msra.mxu0 %v519
    %527 = vmatprep.subr.bf16.mxu0 0
    %528 = vmatpush1.bf16.msra.mxu0 %v520
    %529 = vmatprep.subr.bf16.mxu0 0
    %530 = vmatpush1.bf16.msra.mxu0 0
    %531 = vmatprep.subr.bf16.mxu0 0
    %532 = vmatpush1.bf16.msra.mxu0 0
    %533 = vmatprep.subr.bf16.mxu0 0
    %534 = vmatpush1.bf16.msra.mxu0 0
    %535 = vmatprep.subr.bf16.mxu0 0
    %536 = vmatpush1.bf16.msra.mxu0 0
    %537 = vmatprep.subr.bf16.mxu0 0
    %538 = vmatpush1.bf16.msra.mxu0 0
    %539 = vmatprep.subr.bf16.mxu0 0
    %540 = vmatpush1.bf16.msra.mxu0 0
    %541 = vmatprep.subr.bf16.mxu0 0
    %542 = vmatpush1.bf16.msra.mxu0 0
    %543 = vmatprep.subr.bf16.mxu0 0
    %544 = vmatpush1.bf16.msra.mxu0 0
    %545 = vmatprep.subr.bf16.mxu0 0
    %546 = vmatpush1.bf16.msra.mxu0 0
    %547 = vmatprep.subr.bf16.mxu0 0
    %548 = vmatpush1.bf16.msra.mxu0 0
    %549 = vmatprep.subr.bf16.mxu0 0
    %550 = vmatpush1.bf16.msra.mxu0 0
    %551 = vmatprep.subr.bf16.mxu0 0
    %552 = vmatpush1.bf16.msra.mxu0 0
    %553 = vmatprep.mubr.bf16.mxu0 0
    %554 = vmatmul.mubr.bf16.gmra.mrb[0].mxu0 %v269
    %v555 = vpop.f32.mrb[0].mxu0
    %v556 = vadd.f32 0.0, %v555
    %v557 = vpop.f32.mrb[0].mxu0
    %v558 = vpop.f32.mrb[0].mxu0
    %v559 = vadd.f32 0.0, %v558
    %v560 = vpop.f32.mrb[0].mxu0
    %561 = vmatprep.mubr.bf16.mxu0 0
    %562 = vmatmul.mubr.bf16.gmra.mrb[0].mxu0 %v272
    %v563 = vpop.f32.mrb[0].mxu0
    %v564 = vadd.f32 0.0, %v563
    %v565 = vpop.f32.mrb[0].mxu0
    %v566 = vpop.f32.mrb[0].mxu0
    %v567 = vadd.f32 0.0, %v566
    %v568 = vpop.f32.mrb[0].mxu0
    %569 = vmatprep.mubr.bf16.mxu0 0
    %570 = vmatmul.mubr.bf16.gmra.mrb[0].mxu0 %v275
    %v571 = vpop.f32.mrb[0].mxu0
    %v572 = vadd.f32 0.0, %v571
    %v573 = vpop.f32.mrb[0].mxu0
    %v574 = vpop.f32.mrb[0].mxu0
    %v575 = vadd.f32 0.0, %v574
    %v576 = vpop.f32.mrb[0].mxu0
    %577 = vmatprep.mubr.bf16.mxu0 0
    %578 = vmatmul.mubr.bf16.gmra.mrb[0].mxu0 %v278
    %v579 = vpop.f32.mrb[0].mxu0
    %v580 = vadd.f32 0.0, %v579
    %v581 = vpop.f32.mrb[0].mxu0
    %v582 = vpop.f32.mrb[0].mxu0
    %v583 = vadd.f32 0.0, %v582
    %v584 = vpop.f32.mrb[0].mxu0
    %585 = vdwg.mxu0
    %v586 = vmul.f32 %v556, %v198
    %v587 = vmul.f32 %v559, %v203
    %v588 = vmul.f32 %v564, %v208
    %v589 = vmul.f32 %v567, %v213
    %v590 = vmul.f32 %v572, %v218
    %v591 = vmul.f32 %v575, %v223
    %v592 = vmul.f32 %v580, %v228
    %v593 = vmul.f32 %v583, %v233
    %v594 = vld [vmem:[%s6] sm:$0x1]
    %v596 = vlaneseq
    %v597 = vshrl.u32 %v596, 7
    %v598 = vsub.s32 0, %v597
    %v599 = vrot.slane %v594, %v598
    %v601 = vadd.f32 %v586, %v599
    %v602 = vadd.f32 %v587, %v599
    %v603 = vadd.f32 %v588, %v599
    %v604 = vadd.f32 %v589, %v599
    %v605 = vadd.f32 %v590, %v599
    %v606 = vadd.f32 %v591, %v599
    %v607 = vadd.f32 %v592, %v599
    %v608 = vadd.f32 %v593, %v599
    %v609 = vpack.c.bf16 %v602, %v601
    %v610 = vpack.c.bf16 %v604, %v603
    %v611 = vpack.c.bf16 %v606, %v605
    %v612 = vpack.c.bf16 %v608, %v607
    %v617 = vunpack.c.l.b16 %v609
    %v618 = vunpack.c.h.b16 %v609
    %v619 = vunpack.c.l.b16 %v610
    %v620 = vunpack.c.h.b16 %v610
    %v621 = vunpack.c.l.b16 %v611
    %v622 = vunpack.c.h.b16 %v611
    %v623 = vunpack.c.l.b16 %v612
    %v624 = vunpack.c.h.b16 %v612
    %v625 = vpack.c.b16 %v617, %v617
    %v626 = vpack.c.b16 %v618, %v618
    %v627 = vpack.c.b16 %v619, %v619
    %v628 = vpack.c.b16 %v620, %v620
    %v629 = vpack.c.b16 %v621, %v621
    %v630 = vpack.c.b16 %v622, %v622
    %v631 = vpack.c.b16 %v623, %v623
    %v632 = vpack.c.b16 %v624, %v624
    %641 = vst [vmem:[#allocation7] sm:$0xf] %v625
    %642 = vst [vmem:[#allocation7 + $0x4] sm:$0xf] %v626
    %643 = vst [vmem:[#allocation7 + $0x8] sm:$0xf] %v627
    %644 = vst [vmem:[#allocation7 + $0xc] sm:$0xf] %v628
    %645 = vst [vmem:[#allocation7 + $0x10] sm:$0xf] %v629
    %646 = vst [vmem:[#allocation7 + $0x14] sm:$0xf] %v630
    %647 = vst [vmem:[#allocation7 + $0x18] sm:$0xf] %v631
    %648 = vst [vmem:[#allocation7 + $0x1c] sm:$0xf] %v632
    %v649 = vmax.f32 %v601, 0.0
    %v650 = vmax.f32 %v602, 0.0
    %v651 = vmax.f32 %v603, 0.0
    %v652 = vmax.f32 %v604, 0.0
    %v653 = vmax.f32 %v605, 0.0
    %v654 = vmax.f32 %v606, 0.0
    %v655 = vmax.f32 %v607, 0.0
    %v656 = vmax.f32 %v608, 0.0
    %v657 = vpack.c.bf16 %v650, %v649
    %v658 = vpack.c.bf16 %v652, %v651
    %v659 = vpack.c.bf16 %v654, %v653
    %v660 = vpack.c.bf16 %v656, %v655
    %v661 = vld [vmem:[%s7] sm:$0xf]
    %v662 = vld [vmem:[%s7 + $0x4] sm:$0xf]
    %v663 = vld [vmem:[%s7 + $0x8] sm:$0xf]
    %v664 = vld [vmem:[%s7 + $0xc] sm:$0xf]
    %v665 = vld [vmem:[%s7 + $0x10] sm:$0xf]
    %v666 = vld [vmem:[%s7 + $0x14] sm:$0xf]
    %v667 = vld [vmem:[%s7 + $0x18] sm:$0xf]
    %v668 = vld [vmem:[%s7 + $0x1c] sm:$0xf]
    %v669 = vld [vmem:[%s7 + $0x20] sm:$0xf]
    %v670 = vld [vmem:[%s7 + $0x24] sm:$0xf]
    %v671 = vld [vmem:[%s7 + $0x28] sm:$0xf]
    %v672 = vld [vmem:[%s7 + $0x2c] sm:$0xf]
    %v673 = vld [vmem:[%s7 + $0x30] sm:$0xf]
    %v674 = vld [vmem:[%s7 + $0x34] sm:$0xf]
    %v675 = vld [vmem:[%s7 + $0x38] sm:$0xf]
    %v676 = vld [vmem:[%s7 + $0x3c] sm:$0xf]
    %v677 = vld [vmem:[%s8] sm:$0x1]
    %v679 = vlaneseq
    %v680 = vshrl.u32 %v679, 7
    %v681 = vsub.s32 0, %v680
    %v682 = vrot.slane %v677, %v681
    %v700 = vunpack.c.l.b16 %v661
    %v701 = vunpack.c.l.b16 %v662
    %v702 = vunpack.c.l.b16 %v663
    %v703 = vunpack.c.l.b16 %v664
    %v704 = vunpack.c.l.b16 %v665
    %v705 = vunpack.c.l.b16 %v666
    %v706 = vunpack.c.l.b16 %v667
    %v707 = vunpack.c.l.b16 %v668
    %v708 = vunpack.c.l.b16 %v669
    %v709 = vunpack.c.l.b16 %v670
    %v710 = vunpack.c.l.b16 %v671
    %v711 = vunpack.c.l.b16 %v672
    %v712 = vunpack.c.l.b16 %v673
    %v713 = vunpack.c.l.b16 %v674
    %v714 = vunpack.c.l.b16 %v675
    %v715 = vunpack.c.l.b16 %v676
    %v716 = vpack.c.b16 %v701, %v700
    %v717 = vpack.c.b16 %v703, %v702
    %v718 = vpack.c.b16 %v705, %v704
    %v719 = vpack.c.b16 %v707, %v706
    %v720 = vpack.c.b16 %v709, %v708
    %v721 = vpack.c.b16 %v711, %v710
    %v722 = vpack.c.b16 %v713, %v712
    %v723 = vpack.c.b16 %v715, %v714
    %732 = vmatprep.subr.bf16.mxu0 0
    %733 = vmatpush1.bf16.msra.mxu0 %v716
    %734 = vmatprep.subr.bf16.mxu0 0
    %735 = vmatpush1.bf16.msra.mxu0 %v717
    %736 = vmatprep.subr.bf16.mxu0 0
    %737 = vmatpush1.bf16.msra.mxu0 %v718
    %738 = vmatprep.subr.bf16.mxu0 0
    %739 = vmatpush1.bf16.msra.mxu0 %v719
    %740 = vmatprep.subr.bf16.mxu0 0
    %741 = vmatpush1.bf16.msra.mxu0 %v720
    %742 = vmatprep.subr.bf16.mxu0 0
    %743 = vmatpush1.bf16.msra.mxu0 %v721
    %744 = vmatprep.subr.bf16.mxu0 0
    %745 = vmatpush1.bf16.msra.mxu0 %v722
    %746 = vmatprep.subr.bf16.mxu0 0
    %747 = vmatpush1.bf16.msra.mxu0 %v723
    %748 = vmatprep.subr.bf16.mxu0 0
    %749 = vmatpush1.bf16.msra.mxu0 0
    %750 = vmatprep.subr.bf16.mxu0 0
    %751 = vmatpush1.bf16.msra.mxu0 0
    %752 = vmatprep.subr.bf16.mxu0 0
    %753 = vmatpush1.bf16.msra.mxu0 0
    %754 = vmatprep.subr.bf16.mxu0 0
    %755 = vmatpush1.bf16.msra.mxu0 0
    %756 = vmatprep.subr.bf16.mxu0 0
    %757 = vmatpush1.bf16.msra.mxu0 0
    %758 = vmatprep.subr.bf16.mxu0 0
    %759 = vmatpush1.bf16.msra.mxu0 0
    %760 = vmatprep.subr.bf16.mxu0 0
    %761 = vmatpush1.bf16.msra.mxu0 0
    %762 = vmatprep.subr.bf16.mxu0 0
    %763 = vmatpush1.bf16.msra.mxu0 0
    %764 = vmatprep.mubr.bf16.mxu0 0
    %765 = vmatmul.mubr.bf16.gmra.mrb[0].mxu0 %v657
    %v766 = vpop.f32.mrb[0].mxu0
    %v767 = vadd.f32 %v682, %v766
    %v768 = vpop.f32.mrb[0].mxu0
    %v769 = vpop.f32.mrb[0].mxu0
    %v770 = vadd.f32 %v682, %v769
    %v771 = vpop.f32.mrb[0].mxu0
    %772 = vmatprep.mubr.bf16.mxu0 0
    %773 = vmatmul.mubr.bf16.gmra.mrb[0].mxu0 %v658
    %v774 = vpop.f32.mrb[0].mxu0
    %v775 = vadd.f32 %v682, %v774
    %v776 = vpop.f32.mrb[0].mxu0
    %v777 = vpop.f32.mrb[0].mxu0
    %v778 = vadd.f32 %v682, %v777
    %v779 = vpop.f32.mrb[0].mxu0
    %780 = vmatprep.mubr.bf16.mxu0 0
    %781 = vmatmul.mubr.bf16.gmra.mrb[0].mxu0 %v659
    %v782 = vpop.f32.mrb[0].mxu0
    %v783 = vadd.f32 %v682, %v782
    %v784 = vpop.f32.mrb[0].mxu0
    %v785 = vpop.f32.mrb[0].mxu0
    %v786 = vadd.f32 %v682, %v785
    %v787 = vpop.f32.mrb[0].mxu0
    %788 = vmatprep.mubr.bf16.mxu0 0
    %789 = vmatmul.mubr.bf16.gmra.mrb[0].mxu0 %v660
    %v790 = vpop.f32.mrb[0].mxu0
    %v791 = vadd.f32 %v682, %v790
    %v792 = vpop.f32.mrb[0].mxu0
    %v793 = vpop.f32.mrb[0].mxu0
    %v794 = vadd.f32 %v682, %v793
    %v795 = vpop.f32.mrb[0].mxu0
    %796 = vdwg.mxu0
    %v797 = vpack.c.bf16 %v770, %v767
    %v798 = vpack.c.bf16 %v778, %v775
    %v799 = vpack.c.bf16 %v786, %v783
    %v800 = vpack.c.bf16 %v794, %v791
    %v805 = vunpack.c.l.b16 %v797
    %v806 = vunpack.c.h.b16 %v797
    %v807 = vunpack.c.l.b16 %v798
    %v808 = vunpack.c.h.b16 %v798
    %v809 = vunpack.c.l.b16 %v799
    %v810 = vunpack.c.h.b16 %v799
    %v811 = vunpack.c.l.b16 %v800
    %v812 = vunpack.c.h.b16 %v800
    %v813 = vpack.c.b16 %v805, %v805
    %v814 = vpack.c.b16 %v806, %v806
    %v815 = vpack.c.b16 %v807, %v807
    %v816 = vpack.c.b16 %v808, %v808
    %v817 = vpack.c.b16 %v809, %v809
    %v818 = vpack.c.b16 %v810, %v810
    %v819 = vpack.c.b16 %v811, %v811
    %v820 = vpack.c.b16 %v812, %v812
    %829 = vst [vmem:[#allocation8] sm:$0xf] %v813
    %830 = vst [vmem:[#allocation8 + $0x4] sm:$0xf] %v814
    %831 = vst [vmem:[#allocation8 + $0x8] sm:$0xf] %v815
    %832 = vst [vmem:[#allocation8 + $0xc] sm:$0xf] %v816
    %833 = vst [vmem:[#allocation8 + $0x10] sm:$0xf] %v817
    %834 = vst [vmem:[#allocation8 + $0x14] sm:$0xf] %v818
    %835 = vst [vmem:[#allocation8 + $0x18] sm:$0xf] %v819
    %836 = vst [vmem:[#allocation8 + $0x1c] sm:$0xf] %v820
    // Predicated region
    $region46: #{tpu_custom_call.1} parent=1 // pred_check
      _
    $region47: #{tpu_custom_call.1} parent=1 // pred_check_branch
      %838 = sbr.rel (0) target = $region49
    $region48: #{tpu_custom_call.1} parent=1 // pred_region
      %s840 = ssub.s32 512, 512
      %841 = vsyncadd [#allocation4], %s840
      %s842 = sshll.u32 [#allocation7], 4
      %s843 = int_to_ptr.vmem [resolvable:$true] %s842
      %848 = dma.vmem_to_hbm [thread:$0]  %s843, 512, %s9, [#allocation4], 64, 64, 4
    $region49: #{tpu_custom_call.1} parent=1 // pred_fallthru
      _
    // Predicated region
    $region50: #{tpu_custom_call.1} parent=1 // pred_check
      _
    $region51: #{tpu_custom_call.1} parent=1 // pred_check_branch
      %850 = sbr.rel (0) target = $region53
    $region52: #{tpu_custom_call.1} parent=1 // pred_region
      %s852 = ssub.s32 512, 512
      %853 = vsyncadd [#allocation9], %s852
      %s854 = sshll.u32 [#allocation8], 4
      %s855 = int_to_ptr.vmem [resolvable:$true] %s854
      %860 = dma.vmem_to_hbm [thread:$0]  %s855, 512, %s10, [#allocation9], 64, 64, 4
    $region53: #{tpu_custom_call.1} parent=1 // pred_fallthru
      _
    // Predicated region
    $region54: #{tpu_custom_call.1} parent=1 // pred_check
      _
    $region55: #{tpu_custom_call.1} parent=1 // pred_check_branch
      %862 = sbr.rel (0) target = $region57
    $region56: #{tpu_custom_call.1} parent=1 // pred_region
      %863 = dma.done [#allocation4], 512
    $region57: #{tpu_custom_call.1} parent=1 // pred_fallthru
      _
    // Predicated region
    $region58: #{tpu_custom_call.1} parent=1 // pred_check
      _
    $region59: #{tpu_custom_call.1} parent=1 // pred_check_branch
      %865 = sbr.rel (0) target = $region61
    $region60: #{tpu_custom_call.1} parent=1 // pred_region
      %866 = dma.done [#allocation9], 512
    $region61: #{tpu_custom_call.1} parent=1 // pred_fallthru
      _
    %867 = vsyncpa [#allocation3], 1
    %868 = vsyncpa [#allocation6], 1
    %869 = vsyncpa [#allocation4], 1
    %870 = vsyncpa [#allocation9], 1

</llo_original>
